<compile_context>
chip_gen: v6e
topology: v6e:2x2x1
jax: 0.10.0
libtpu: 0.0.40
codegen_flags: <defaults>
</compile_context>

<pallas_src>
import math

import jax
import jax.numpy as jnp
from jax.experimental import pallas as pl
from jax.experimental.pallas import tpu as pltpu


def _round_up(v, m):
    return (v + m - 1) // m * m


def _pick_tile(dim, max_tile, align):
    """Largest tile <= max_tile (multiple of align) keeping padding waste <= 25%."""
    dim_a = _round_up(dim, align)
    if dim_a <= max_tile:
        return dim_a
    t = max_tile
    while t > align and 4 * (_round_up(dim, t) - dim) > dim:
        t //= 2
    return max(t, align)


# ---------------------------------------------------------------------------
# Pallas kernels
# ---------------------------------------------------------------------------

def _proj_kernel(x_ref, w_ref, b_ref, o_ref, acc_ref):
    # x: (tm, tk) bf16, w: (tk, tn) bf16, b: (1, tn) f32, o: (tm, tn) f32.
    @pl.when(pl.program_id(2) == 0)
    def _init():
        acc_ref[...] = jnp.zeros_like(acc_ref)

    acc_ref[...] += jnp.dot(x_ref[...], w_ref[...],
                            preferred_element_type=jnp.float32)

    @pl.when(pl.program_id(2) == pl.num_programs(2) - 1)
    def _finalize():
        o_ref[...] = (acc_ref[...] + b_ref[...]).astype(o_ref.dtype)


def proj_matmul(x2, w2, b2):
    """Tiled MXU matmul + bias == ConvTranspose2d(in,out,(1,S)) on a width-1 input."""
    M, K = x2.shape
    K2, N = w2.shape
    assert K == K2
    # Padding-aware tile choice (M up to 256, N up to 512, K up to 512).
    tm = _pick_tile(M, 256, 8)
    tn = _pick_tile(N, 512, 128)
    tk = min(512, _round_up(K, 128))
    Mp, Kp, Np = _round_up(M, tm), _round_up(K, tk), _round_up(N, tn)

    xpad = jnp.pad(x2, ((0, Mp - M), (0, Kp - K)))
    wpad = jnp.pad(w2, ((0, Kp - K), (0, Np - N)))
    bpad = jnp.pad(b2, ((0, 0), (0, Np - N)))

    isz = jnp.dtype(x2.dtype).itemsize
    live = (2 * (tm * tk + tk * tn) * isz     # double-buffered bf16 inputs
            + 2 * tm * tn * 4                 # double-buffered f32 output
            + tm * tn * 4 + 2 * tn * 4)       # f32 accumulator + bias
    vmem_limit = int(min(max(2 * live, 16 << 20), 40 << 20))

    out = pl.pallas_call(
        _proj_kernel,
        out_shape=jax.ShapeDtypeStruct((Mp, Np), jnp.float32),
        grid_spec=pltpu.PrefetchScalarGridSpec(
            num_scalar_prefetch=0,
            grid=(Mp // tm, Np // tn, Kp // tk),
            in_specs=[pl.BlockSpec((tm, tk), lambda i, j, k: (i, k)),
                      pl.BlockSpec((tk, tn), lambda i, j, k: (k, j)),
                      pl.BlockSpec((1, tn), lambda i, j, k: (0, j))],
            out_specs=pl.BlockSpec((tm, tn), lambda i, j, k: (i, j)),
            scratch_shapes=[pltpu.VMEM((tm, tn), jnp.float32)]),
        compiler_params=pltpu.CompilerParams(
            dimension_semantics=("parallel", "parallel", "arbitrary"),
            vmem_limit_bytes=vmem_limit),
    )(xpad, wpad, bpad)
    return out[:M, :N]


def _score_kernel_fused(x_ref, t_ref, o_ref):
    # x: (1, B, C, Lt), t: (copies, B, C, Lt), o: (1, copies, B, Lt)
    # scores[n, b, l] = sum_c x[b, c, l] * t[n, b, c, l]  (VPU mul + XLU sublane reduce)
    x = x_ref[0]
    for n in range(t_ref.shape[0]):            # static unroll over copies
        o_ref[0, n] = jnp.sum(x * t_ref[n], axis=1)


def _score_kernel_percopy(x_ref, t_ref, o_ref):
    # x: (1, B, C, Lt), t: (1, B, C, Lt), o: (1, 1, B, Lt)
    o_ref[0, 0] = jnp.sum(x_ref[0] * t_ref[0], axis=1)


def fused_step_scores(x_steps, targets, steps, offset):
    """All prediction steps' einsum('bct,nbct->nbt') in one pallas_call.

    x_steps : (S, B, C, T) projection output, one plane per step.
    targets : (copies, B, C, T)
    Returns scores (steps, copies, B, Tpad); scores[i, n, b, t] is valid for
    t in [offset+i, T) and equals sum_c x_steps[i,b,c,t-offset-i]*targets[n,b,c,t].
    """
    S, B, C, T = x_steps.shape
    copies = targets.shape[0]
    Tp = _round_up(T, 128)

    # Pre-shift x per step so the kernel sees aligned, lane-contiguous operands.
    # (One-time, steps*B*C*T bytes — no `copies` factor; replaces the per-step XLA
    #  slice copies of targets entirely.)
    shifted = []
    for i in range(steps):
        off = i + offset
        xi = x_steps[i, :, :, :T - off]
        xi = jnp.pad(xi, ((0, 0), (0, 0), (off, Tp - T)))
        shifted.append(xi)
    xsh = jnp.stack(shifted, axis=0).astype(jnp.float32)            # (steps, B, C, Tp)
    tpad = jnp.pad(targets, ((0, 0), (0, 0), (0, 0), (0, Tp - T)))  # (copies,B,C,Tp)

    out_shape = jax.ShapeDtypeStruct((steps, copies, B, Tp), jnp.float32)
    lane_cands = [c for c in (512, 256, 128) if Tp % c == 0] or [128]

    # Preferred schedule: hold all copies of the targets tile resident in VMEM and run
    # the prediction steps innermost -> targets read from HBM exactly once.
    tgt_budget = 8 << 20
    fused_lt = None
    for cand in lane_cands:
        if copies * B * C * cand * 4 <= tgt_budget:
            fused_lt = cand
            break

    # TODO(synk): targets/xsh could be stored in bf16 and upcast in-kernel to halve HBM
    # bytes on v6e/v7x; kept f32 here so the score path is exact on all generations.
    if fused_lt is not None:
        Lt = fused_lt
        n_tt = Tp // Lt
        tblk = copies * B * C * Lt * 4
        xblk = B * C * Lt * 4
        vmem_limit = int(min(max(2 * (tblk + xblk) + (8 << 20), 16 << 20), 48 << 20))
        return pl.pallas_call(
            _score_kernel_fused,
            out_shape=out_shape,
            grid_spec=pltpu.PrefetchScalarGridSpec(
                num_scalar_prefetch=0,
                grid=(n_tt, steps),        # steps innermost -> targets block resident
                in_specs=[pl.BlockSpec((1, B, C, Lt), lambda tt, i: (i, 0, 0, tt)),
                          pl.BlockSpec((copies, B, C, Lt),
                                       lambda tt, i: (0, 0, 0, tt))],
                out_specs=pl.BlockSpec((1, copies, B, Lt),
                                       lambda tt, i: (i, 0, 0, tt))),
            compiler_params=pltpu.CompilerParams(
                dimension_semantics=("parallel", "arbitrary"),
                vmem_limit_bytes=vmem_limit),
        )(xsh, tpad)

    # Fallback for very large copies*B*C: one copy per grid step; copies innermost so
    # the shifted-x block stays VMEM resident across copies (no re-DMA of x).
    # TODO(synk): if B*C*128*4 itself exceeds VMEM, C would need to be tiled with an
    # accumulator axis; not required for realistic wav2vec dims.
    Lt = 128
    for cand in lane_cands:
        if B * C * cand * 4 <= (4 << 20):
            Lt = cand
            break
    n_tt = Tp // Lt
    blk = B * C * Lt * 4
    vmem_limit = int(min(max(6 * blk + (8 << 20), 16 << 20), 48 << 20))
    return pl.pallas_call(
        _score_kernel_percopy,
        out_shape=out_shape,
        grid_spec=pltpu.PrefetchScalarGridSpec(
            num_scalar_prefetch=0,
            grid=(steps, n_tt, copies),
            in_specs=[pl.BlockSpec((1, B, C, Lt), lambda i, tt, n: (i, 0, 0, tt)),
                      pl.BlockSpec((1, B, C, Lt), lambda i, tt, n: (n, 0, 0, tt))],
            out_specs=pl.BlockSpec((1, 1, B, Lt), lambda i, tt, n: (i, n, 0, tt))),
        compiler_params=pltpu.CompilerParams(
            dimension_semantics=("parallel", "parallel", "arbitrary"),
            vmem_limit_bytes=vmem_limit),
    )(xsh, tpad)


# ---------------------------------------------------------------------------
# Plain-JAX glue (negative sampling, dropout, ragged flatten)
# ---------------------------------------------------------------------------

def sample_negatives(key, y, n_negatives, cross_sample_negatives, sample_distance):
    # Mirrors Wav2VecPredictionsModel.sample_negatives.
    # TODO(synk): torch RNG stream is not reproducible in JAX; semantics/shapes match.
    bsz, fsz, tsz = y.shape
    y_flat = jnp.transpose(y, (1, 0, 2)).reshape(fsz, bsz * tsz)
    cross_high = tsz * bsz
    high = tsz if sample_distance is None else min(tsz, sample_distance)
    assert high > 1
    k1, k2 = jax.random.split(key)
    neg_idxs = None
    cross_neg_idxs = None
    if n_negatives > 0:
        tszs = jnp.repeat(jnp.arange(tsz), n_negatives)
        neg_idxs = jax.random.randint(k1, (bsz, n_negatives * tsz), 0, high - 1)
        neg_idxs = jnp.where(neg_idxs >= tszs[None, :], neg_idxs + 1, neg_idxs)
    if cross_sample_negatives > 0:
        tszs_c = jnp.repeat(jnp.arange(tsz), cross_sample_negatives)
        cross_neg_idxs = jax.random.randint(
            k2, (bsz, cross_sample_negatives * tsz), 0, cross_high - 1)
        cross_neg_idxs = jnp.where(cross_neg_idxs >= tszs_c[None, :],
                                   cross_neg_idxs + 1, cross_neg_idxs)
    if n_negatives > 0:
        neg_idxs = neg_idxs + (jnp.arange(bsz) * high)[:, None]
    else:
        neg_idxs = cross_neg_idxs
    if cross_sample_negatives > 0 and n_negatives > 0:
        neg_idxs = jnp.concatenate([neg_idxs, cross_neg_idxs], axis=1)
    negs = jnp.take(y_flat, neg_idxs.reshape(-1), axis=1)
    negs = negs.reshape(fsz, bsz, n_negatives + cross_sample_negatives, tsz)
    return jnp.transpose(negs, (2, 1, 0, 3))   # (copies-1, B, C, T)


def wav2vec_predictions_forward(params, x, y, cfg, rng, use_pallas=True):
    bsz, in_dim, tsz = x.shape
    W = params["weight"]            # (in_dim, out_dim, 1, S)  torch ConvTranspose2d layout
    bias = params["bias"]           # (out_dim,)
    _, out_dim, _, S = W.shape

    # --- project_to_steps: ConvTranspose2d(in_dim, out_dim, (1, S)) -----------
    x2 = jnp.transpose(x, (0, 2, 1)).reshape(bsz * tsz, in_dim)
    w2 = W.reshape(in_dim, out_dim * S)
    b2 = jnp.repeat(bias, S).reshape(1, out_dim * S).astype(jnp.float32)
    # bf16 MXU inputs, f32 accumulation (reference path uses identical quantization).
    x2b = x2.astype(jnp.bfloat16)
    w2b = w2.astype(jnp.bfloat16)
    if use_pallas:
        proj = proj_matmul(x2b, w2b, b2)                       # (B*T, out_dim*S) f32
    else:
        proj = x2b.astype(jnp.float32) @ w2b.astype(jnp.float32) + b2

    # Lane-major per-step layout: (S, B, C, T)
    x_steps = jnp.transpose(proj.reshape(bsz, tsz, out_dim, S), (3, 0, 2, 1))

    # --- dropout ---------------------------------------------------------------
    rng, kd, kn = jax.random.split(rng, 3)
    if cfg["dropout"] > 0.0:
        # TODO(synk): torch RNG stream not reproducible; inverted dropout via jax.random.
        keep = jax.random.bernoulli(kd, 1.0 - cfg["dropout"], x_steps.shape)
        x_steps = x_steps * keep.astype(x_steps.dtype) / (1.0 - cfg["dropout"])

    # --- negatives + targets ---------------------------------------------------
    negatives = sample_negatives(kn, y, cfg["n_negatives"],
                                 cfg["cross_sample_negatives"],
                                 cfg["sample_distance"])
    targets = jnp.concatenate([y[None].astype(jnp.float32),
                               negatives.astype(jnp.float32)], axis=0)  # (copies,B,C,T)
    copies = targets.shape[0]
    offset = cfg["offset"]
    steps = min(S, tsz - offset)

    if use_pallas:
        scores_all = fused_step_scores(x_steps, targets, steps, offset)
        # (steps, copies, B, Tp)

    preds = []
    labels_parts = []
    weights_parts = []
    for i in range(steps):
        off = i + offset
        L = tsz - off
        if use_pallas:
            scores = scores_all[i, :, :, off:off + L]            # (copies, B, L) 'nbt'
        else:
            scores = jnp.einsum("bct,nbct->nbt",
                                x_steps[i, :, :, :L], targets[:, :, :, off:])
        if cfg["infonce"]:
            # torch: einsum('bct,nbct->tbn').flatten()
            preds.append(jnp.transpose(scores, (2, 1, 0)).reshape(-1))
        else:
            preds.append(scores.reshape(-1))
            pos_num = L * bsz
            seg = L * bsz * copies
            labels_parts.append(jnp.concatenate(
                [jnp.ones((pos_num,), jnp.float32),
                 jnp.zeros((seg - pos_num,), jnp.float32)]))
            if cfg["balanced_classes"]:
                weights_parts.append(jnp.concatenate(
                    [jnp.ones((pos_num,), jnp.float32),
                     jnp.full((seg - pos_num,), 1.0 / cfg["n_negatives"],
                              jnp.float32)]))

    predictions = jnp.concatenate(preds)
    if cfg["infonce"]:
        labels = jnp.zeros((predictions.shape[0] // copies,), dtype=jnp.int32)
        predictions = predictions.reshape(-1, copies)
        return predictions, labels
    labels = jnp.concatenate(labels_parts)
    if cfg["balanced_classes"]:
        weights = jnp.concatenate(weights_parts)
        return predictions, (labels, weights)
    return predictions, labels


# ---------------------------------------------------------------------------
# Demo / self-check
# ---------------------------------------------------------------------------

if __name__ == "__main__":
    key = jax.random.PRNGKey(0)
    k_x, k_y, k_w, k_b, k_fwd = jax.random.split(key, 5)

    bsz, in_dim, out_dim, tsz = 2, 32, 32, 16
    prediction_steps = 4
    cfg = dict(n_negatives=2, cross_sample_negatives=1, sample_distance=None,
               dropout=0.0, offset=1, balanced_classes=False, infonce=True)

    x = jax.random.normal(k_x, (bsz, in_dim, tsz), dtype=jnp.float32)
    y = jax.random.normal(k_y, (bsz, out_dim, tsz), dtype=jnp.float32)

    fan = in_dim * 1 * prediction_steps
    W = jax.random.normal(k_w, (in_dim, out_dim, 1, prediction_steps),
                          dtype=jnp.float32) / math.sqrt(fan)
    b = jax.random.normal(k_b, (out_dim,), dtype=jnp.float32) * 0.01
    params = {"weight": W, "bias": b}

    preds, labels = wav2vec_predictions_forward(params, x, y, cfg, k_fwd,
                                                use_pallas=True)
    preds = jax.block_until_ready(preds)
    labels = jax.block_until_ready(labels)

    # Pure-JAX reference (same sampled negatives, same bf16 quantization of the
    # projection inputs) for correctness.
    preds_ref, labels_ref = wav2vec_predictions_forward(params, x, y, cfg, k_fwd,
                                                        use_pallas=False)
    assert preds.shape == preds_ref.shape, (preds.shape, preds_ref.shape)
    assert labels.shape == labels_ref.shape
    assert jnp.allclose(preds, preds_ref, atol=1e-4, rtol=1e-4), \
        float(jnp.max(jnp.abs(preds - preds_ref)))

    print("KERNEL_OK")
</pallas_src>

<mosaic_0001>
module attributes {stable_mosaic.version = 11 : i64} {
  func.func @_proj_kernel(%arg0: i32, %arg1: i32, %arg2: i32, %arg3: memref<32x128xbf16, #tpu.memory_space<vmem>>, %arg4: memref<128x128xbf16, #tpu.memory_space<vmem>>, %arg5: memref<1x128xf32, #tpu.memory_space<vmem>>, %arg6: memref<32x128xf32, #tpu.memory_space<vmem>>, %arg7: memref<32x128xf32, #tpu.memory_space<vmem>>) attributes {dimension_semantics = [#tpu.dimension_semantics<parallel>, #tpu.dimension_semantics<parallel>, #tpu.dimension_semantics<arbitrary>], iteration_bounds = array<i64: 1, 1, 1>, scalar_prefetch = 0 : i64, scratch_operands = 1 : i64, tpu.core_type = #tpu.core_type<tc>, window_params = [{transform_indices = @transform_0, window_bounds = array<i64: 32, 128>}, {transform_indices = @transform_1, window_bounds = array<i64: 128, 128>}, {transform_indices = @transform_2, window_bounds = array<i64: 1, 128>}, {transform_indices = @transform_3, window_bounds = array<i64: 32, 128>}]} {
    %c0_i32 = arith.constant 0 : i32
    %0 = arith.cmpi eq, %arg2, %c0_i32 : i32
    %1 = arith.extui %0 : i1 to i32
    %c0_i32_0 = arith.constant 0 : i32
    %2 = arith.cmpi ne, %1, %c0_i32_0 : i32
    scf.if %2 {
      %cst_10 = arith.constant 0.000000e+00 : f32
      %12 = vector.broadcast %cst_10 : f32 to vector<32x128xf32>
      %c0_11 = arith.constant 0 : index
      %c0_12 = arith.constant 0 : index
      %13 = vector.load %arg7[%c0_11, %c0_12] : memref<32x128xf32, #tpu.memory_space<vmem>>, vector<32x128xf32>
      tpu.vector_store %arg7[%c0_11, %c0_12], %12 {strides = array<i32>} : memref<32x128xf32, #tpu.memory_space<vmem>>, vector<32x128xf32>,
    } else {
    }
    %c0 = arith.constant 0 : index
    %c0_1 = arith.constant 0 : index
    %3 = vector.load %arg7[%c0, %c0_1] : memref<32x128xf32, #tpu.memory_space<vmem>>, vector<32x128xf32>
    %c0_2 = arith.constant 0 : index
    %c0_3 = arith.constant 0 : index
    %4 = vector.load %arg3[%c0_2, %c0_3] : memref<32x128xbf16, #tpu.memory_space<vmem>>, vector<32x128xbf16>
    %c0_4 = arith.constant 0 : index
    %c0_5 = arith.constant 0 : index
    %5 = vector.load %arg4[%c0_4, %c0_5] : memref<128x128xbf16, #tpu.memory_space<vmem>>, vector<128x128xbf16>
    %cst = arith.constant dense<0.000000e+00> : vector<32x128xf32>
    %6 = tpu.matmul %4, %5, %cst {dimension_numbers = #tpu.dot_dimension_numbers<[1], [0], [0], [1], [0, 0, 1, 1], [], []>} : vector<32x128xbf16>, vector<128x128xbf16>, vector<32x128xf32> -> vector<32x128xf32>
    %7 = arith.addf %3, %6 : vector<32x128xf32>
    %c0_6 = arith.constant 0 : index
    %c0_7 = arith.constant 0 : index
    %8 = vector.load %arg7[%c0_6, %c0_7] : memref<32x128xf32, #tpu.memory_space<vmem>>, vector<32x128xf32>
    tpu.vector_store %arg7[%c0_6, %c0_7], %7 {strides = array<i32>} : memref<32x128xf32, #tpu.memory_space<vmem>>, vector<32x128xf32>,
    %c0_i32_8 = arith.constant 0 : i32
    %9 = arith.cmpi eq, %arg2, %c0_i32_8 : i32
    %10 = arith.extui %9 : i1 to i32
    %c0_i32_9 = arith.constant 0 : i32
    %11 = arith.cmpi ne, %10, %c0_i32_9 : i32
    scf.if %11 {
      %c0_10 = arith.constant 0 : index
      %c0_11 = arith.constant 0 : index
      %12 = vector.load %arg7[%c0_10, %c0_11] : memref<32x128xf32, #tpu.memory_space<vmem>>, vector<32x128xf32>
      %c0_12 = arith.constant 0 : index
      %c0_13 = arith.constant 0 : index
      %13 = vector.load %arg5[%c0_12, %c0_13] : memref<1x128xf32, #tpu.memory_space<vmem>>, vector<1x128xf32>
      %14 = vector.broadcast %13 : vector<1x128xf32> to vector<32x128xf32>
      %15 = arith.addf %12, %14 : vector<32x128xf32>
      %c0_14 = arith.constant 0 : index
      %c0_15 = arith.constant 0 : index
      %16 = vector.load %arg6[%c0_14, %c0_15] : memref<32x128xf32, #tpu.memory_space<vmem>>, vector<32x128xf32>
      tpu.vector_store %arg6[%c0_14, %c0_15], %15 {strides = array<i32>} : memref<32x128xf32, #tpu.memory_space<vmem>>, vector<32x128xf32>,
    } else {
    }
    return
  }
  func.func @transform_0(%arg0: i32, %arg1: i32, %arg2: i32) -> (i32, i32) {
    %c0_i32 = arith.constant 0 : i32
    return %arg0, %arg2 : i32, i32
  }
  func.func @transform_1(%arg0: i32, %arg1: i32, %arg2: i32) -> (i32, i32) {
    %c0_i32 = arith.constant 0 : i32
    return %arg2, %arg1 : i32, i32
  }
  func.func @transform_2(%arg0: i32, %arg1: i32, %arg2: i32) -> (i32, i32) {
    %c0_i32 = arith.constant 0 : i32
    %c0_i32_0 = arith.constant 0 : i32
    return %c0_i32, %arg1 : i32, i32
  }
  func.func @transform_3(%arg0: i32, %arg1: i32, %arg2: i32) -> (i32, i32) {
    %c0_i32 = arith.constant 0 : i32
    return %arg0, %arg1 : i32, i32
  }
}

</mosaic_0001>

<llo_original>
// kernel: tpu_custom_call.1
$region0: #{tpu_custom_call.1}
  #allocation0 [shape = 'u32[]', space=smem, size = 0x4, offset = 0x4, fixed_abs, tag = 'smem constant byte address 0x4 - core index']
  #allocation1 [shape = 'u32[144,128]{1,0:T(1,128)}', space=vmem, size = 0x12000, scoped, tag = 'internal scratch']
  #allocation2 [shape = 'f32[32,128]{1,0:T(8,128)}', space=vmem, size = 0x4000, scoped, tag = 'scratch operand']
  %s0 = inlined_call_operand.hbm [shape: bf16[32,128], index: 0, kind: input, shape index: {}]
  %s1 = inlined_call_operand.hbm [shape: bf16[128,128], index: 1, kind: input, shape index: {}]
  %s2 = inlined_call_operand.vmem [shape: f32[1,128], index: 2, kind: input, shape index: {}]
  %s3 = inlined_call_operand.hbm [shape: f32[32,128], index: 3, kind: output, shape index: {}]
  %s4 = sld [smem:[#allocation0]]
  $region38: #{tpu_custom_call.1} parent=0
    _
  %s6 = ssub.s32 1, %s4
  %s7 = scalar_select 0, %s6, %s4
  $region1: #{tpu_custom_call.1} parent=0
    #allocation3 [shape = 'u8[8192]{0}', space=vmem, size = 0x2000, scoped, tag = 'input window, operand 0, single buffered']
    #allocation4 [shape = 's32[1]{0}', space=sflag, size = 0x4, scoped, tag = 'scoped memory for tpu_custom_call.1']
    #allocation5 [shape = 's32[1]{0}', space=sflag, size = 0x4, scoped, tag = 'scoped memory for tpu_custom_call.1']
    #allocation6 [shape = 'u8[32768]{0}', space=vmem, size = 0x8000, scoped, tag = 'input window, operand 1, single buffered']
    #allocation7 [shape = 's32[1]{0}', space=sflag, size = 0x4, scoped, tag = 'scoped memory for tpu_custom_call.1']
    #allocation8 [shape = 'u8[16384]{0}', space=vmem, size = 0x4000, scoped, tag = 'output window, operand 0, single buffered']
    %8 = vsyncpa [#allocation4], 0
    %9 = vsyncpa [#allocation7], 0
    %10 = vsyncpa [#allocation5], 0
    // Predicated region
    $region2: #{tpu_custom_call.1} parent=1 // pred_check
      _
    $region3: #{tpu_custom_call.1} parent=1 // pred_check_branch
      %12 = sbr.rel (0) target = $region5
    $region4: #{tpu_custom_call.1} parent=1 // pred_region
      %s14 = ssub.s32 256, 256
      %15 = vsyncadd [#allocation4], %s14
      %s16 = sshll.u32 [#allocation3], 4
      %s17 = int_to_ptr.vmem [resolvable:$true] %s16
      %22 = dma.hbm_to_vmem [thread:$0]  %s0, 256, %s17, [#allocation4], 64, 64, 4
    $region5: #{tpu_custom_call.1} parent=1 // pred_fallthru
      _
    // Predicated region
    $region6: #{tpu_custom_call.1} parent=1 // pred_check
      _
    $region7: #{tpu_custom_call.1} parent=1 // pred_check_branch
      %24 = sbr.rel (0) target = $region9
    $region8: #{tpu_custom_call.1} parent=1 // pred_region
      %s26 = ssub.s32 1024, 1024
      %27 = vsyncadd [#allocation7], %s26
      %s28 = sshll.u32 [#allocation6], 4
      %s29 = int_to_ptr.vmem [resolvable:$true] %s28
      %34 = dma.hbm_to_vmem [thread:$0]  %s1, 1024, %s29, [#allocation7], 64, 64, 4
    $region9: #{tpu_custom_call.1} parent=1 // pred_fallthru
      _
    // Predicated region
    $region10: #{tpu_custom_call.1} parent=1 // pred_check
      _
    $region11: #{tpu_custom_call.1} parent=1 // pred_check_branch
      %36 = sbr.rel (0) target = $region13
    $region12: #{tpu_custom_call.1} parent=1 // pred_region
      _
    $region13: #{tpu_custom_call.1} parent=1 // pred_fallthru
      _
    // Predicated region
    $region14: #{tpu_custom_call.1} parent=1 // pred_check
      _
    $region15: #{tpu_custom_call.1} parent=1 // pred_check_branch
      %38 = sbr.rel (0) target = $region17
    $region16: #{tpu_custom_call.1} parent=1 // pred_region
      %39 = dma.done [#allocation4], 256
    $region17: #{tpu_custom_call.1} parent=1 // pred_fallthru
      _
    // Predicated region
    $region18: #{tpu_custom_call.1} parent=1 // pred_check
      _
    $region19: #{tpu_custom_call.1} parent=1 // pred_check_branch
      %41 = sbr.rel (0) target = $region21
    $region20: #{tpu_custom_call.1} parent=1 // pred_region
      %42 = dma.done [#allocation7], 1024
    $region21: #{tpu_custom_call.1} parent=1 // pred_fallthru
      _
    %p44 = scmp.eq.s32.totalorder 0, 0
    // Predicated region
    $region22: #{tpu_custom_call.1} parent=1 // pred_check
      %p45 = pneg %p44
    $region23: #{tpu_custom_call.1} parent=1 // pred_check_branch
      %47 = sbr.rel (%p45) target = $region25
    $region24: #{tpu_custom_call.1} parent=1 // pred_region
      %48 = vst [vmem:[#allocation2] sm:$0xff] 0.0
      %49 = vst [vmem:[#allocation2 + $0x8] sm:$0xff] 0.0
      %50 = vst [vmem:[#allocation2 + $0x10] sm:$0xff] 0.0
      %51 = vst [vmem:[#allocation2 + $0x18] sm:$0xff] 0.0
    $region25: #{tpu_custom_call.1} parent=1 // pred_fallthru
      _
    %v52 = vld [vmem:[#allocation2] sm:$0xff]
    %v53 = vld [vmem:[#allocation2 + $0x8] sm:$0xff]
    %v54 = vld [vmem:[#allocation2 + $0x10] sm:$0xff]
    %v55 = vld [vmem:[#allocation2 + $0x18] sm:$0xff]
    %v56 = vld [vmem:[#allocation3] sm:$0xf]
    %v57 = vld [vmem:[#allocation3 + $0x4] sm:$0xf]
    %v58 = vld [vmem:[#allocation3 + $0x8] sm:$0xf]
    %v59 = vld [vmem:[#allocation3 + $0xc] sm:$0xf]
    %v60 = vld [vmem:[#allocation6] sm:$0xf]
    %v61 = vld [vmem:[#allocation6 + $0x4] sm:$0xf]
    %v62 = vld [vmem:[#allocation6 + $0x8] sm:$0xf]
    %v63 = vld [vmem:[#allocation6 + $0xc] sm:$0xf]
    %v64 = vld [vmem:[#allocation6 + $0x10] sm:$0xf]
    %v65 = vld [vmem:[#allocation6 + $0x14] sm:$0xf]
    %v66 = vld [vmem:[#allocation6 + $0x18] sm:$0xf]
    %v67 = vld [vmem:[#allocation6 + $0x1c] sm:$0xf]
    %v68 = vld [vmem:[#allocation6 + $0x20] sm:$0xf]
    %v69 = vld [vmem:[#allocation6 + $0x24] sm:$0xf]
    %v70 = vld [vmem:[#allocation6 + $0x28] sm:$0xf]
    %v71 = vld [vmem:[#allocation6 + $0x2c] sm:$0xf]
    %v72 = vld [vmem:[#allocation6 + $0x30] sm:$0xf]
    %v73 = vld [vmem:[#allocation6 + $0x34] sm:$0xf]
    %v74 = vld [vmem:[#allocation6 + $0x38] sm:$0xf]
    %v75 = vld [vmem:[#allocation6 + $0x3c] sm:$0xf]
    %v80 = vunpack.c.l.b16 %v56
    %v81 = vunpack.c.l.b16 %v57
    %v82 = vunpack.c.l.b16 %v58
    %v83 = vunpack.c.l.b16 %v59
    %v84 = vpack.c.b16 %v81, %v80
    %v85 = vpack.c.b16 %v83, %v82
    %v104 = vunpack.c.l.b16 %v60
    %v105 = vunpack.c.l.b16 %v61
    %v106 = vunpack.c.l.b16 %v62
    %v107 = vunpack.c.l.b16 %v63
    %v108 = vunpack.c.l.b16 %v64
    %v109 = vunpack.c.l.b16 %v65
    %v110 = vunpack.c.l.b16 %v66
    %v111 = vunpack.c.l.b16 %v67
    %v112 = vunpack.c.l.b16 %v68
    %v113 = vunpack.c.l.b16 %v69
    %v114 = vunpack.c.l.b16 %v70
    %v115 = vunpack.c.l.b16 %v71
    %v116 = vunpack.c.l.b16 %v72
    %v117 = vunpack.c.l.b16 %v73
    %v118 = vunpack.c.l.b16 %v74
    %v119 = vunpack.c.l.b16 %v75
    %v120 = vpack.c.b16 %v105, %v104
    %v121 = vpack.c.b16 %v107, %v106
    %v122 = vpack.c.b16 %v109, %v108
    %v123 = vpack.c.b16 %v111, %v110
    %v124 = vpack.c.b16 %v113, %v112
    %v125 = vpack.c.b16 %v115, %v114
    %v126 = vpack.c.b16 %v117, %v116
    %v127 = vpack.c.b16 %v119, %v118
    %136 = vmatprep.subr.bf16.mxu0 0
    %137 = vmatpush1.bf16.msra.mxu0 %v127
    %138 = vmatprep.subr.bf16.mxu0 0
    %139 = vmatpush1.bf16.msra.mxu0 %v126
    %140 = vmatprep.subr.bf16.mxu0 0
    %141 = vmatpush1.bf16.msra.mxu0 %v125
    %142 = vmatprep.subr.bf16.mxu0 0
    %143 = vmatpush1.bf16.msra.mxu0 %v124
    %144 = vmatprep.subr.bf16.mxu0 0
    %145 = vmatpush1.bf16.msra.mxu0 %v123
    %146 = vmatprep.subr.bf16.mxu0 0
    %147 = vmatpush1.bf16.msra.mxu0 %v122
    %148 = vmatprep.subr.bf16.mxu0 0
    %149 = vmatpush1.bf16.msra.mxu0 %v121
    %150 = vmatprep.subr.bf16.mxu0 0
    %151 = vmatpush1.bf16.msra.mxu0 %v120
    %152 = vmatprep.subr.bf16.mxu0 0
    %153 = vmatpush2.bf16.msra.mxu0 0
    %154 = vmatprep.subr.bf16.mxu0 0
    %155 = vmatpush2.bf16.msra.mxu0 0
    %156 = vmatprep.subr.bf16.mxu0 0
    %157 = vmatpush2.bf16.msra.mxu0 0
    %158 = vmatprep.subr.bf16.mxu0 0
    %159 = vmatpush2.bf16.msra.mxu0 0
    %160 = vmatprep.subr.bf16.mxu0 0
    %161 = vmatpush2.bf16.msra.mxu0 0
    %162 = vmatprep.subr.bf16.mxu0 0
    %163 = vmatpush2.bf16.msra.mxu0 0
    %164 = vmatprep.subr.bf16.mxu0 0
    %165 = vmatpush2.bf16.msra.mxu0 0
    %166 = vmatprep.subr.bf16.mxu0 0
    %167 = vmatpush2.bf16.msra.mxu0 0
    %168 = vmatprep.mubr.bf16.mxu0 0
    %169 = vmatmul.mubr.bf16.gmra.mxu0 %v84
    %v170 = vpop.f32.mrf.mxu0
    %v171 = vadd.f32 0.0, %v170
    %v172 = vpop.f32.mrf.mxu0
    %v173 = vpop.f32.mrf.mxu0
    %v174 = vadd.f32 0.0, %v173
    %v175 = vpop.f32.mrf.mxu0
    %176 = vmatprep.mubr.bf16.mxu0 0
    %177 = vmatmul.mubr.bf16.gmra.mxu0 %v85
    %v178 = vpop.f32.mrf.mxu0
    %v179 = vadd.f32 0.0, %v178
    %v180 = vpop.f32.mrf.mxu0
    %v181 = vpop.f32.mrf.mxu0
    %v182 = vadd.f32 0.0, %v181
    %v183 = vpop.f32.mrf.mxu0
    %184 = vdwg.mxu0
    %v185 = vadd.f32 %v52, %v171
    %v186 = vadd.f32 %v53, %v174
    %v187 = vadd.f32 %v54, %v179
    %v188 = vadd.f32 %v55, %v182
    %189 = vst [vmem:[#allocation2] sm:$0xff] %v185
    %190 = vst [vmem:[#allocation2 + $0x8] sm:$0xff] %v186
    %191 = vst [vmem:[#allocation2 + $0x10] sm:$0xff] %v187
    %192 = vst [vmem:[#allocation2 + $0x18] sm:$0xff] %v188
    // Predicated region
    $region26: #{tpu_custom_call.1} parent=1 // pred_check
      %p193 = pneg %p44
    $region27: #{tpu_custom_call.1} parent=1 // pred_check_branch
      %195 = sbr.rel (%p193) target = $region29
    $region28: #{tpu_custom_call.1} parent=1 // pred_region
      %v196 = vld [vmem:[#allocation2] sm:$0xff]
      %v197 = vld [vmem:[#allocation2 + $0x8] sm:$0xff]
      %v198 = vld [vmem:[#allocation2 + $0x10] sm:$0xff]
      %v199 = vld [vmem:[#allocation2 + $0x18] sm:$0xff]
      %v200 = vld [vmem:[%s2] sm:$0x1]
      %v202 = vlaneseq
      %v203 = vshrl.u32 %v202, 7
      %v204 = vsub.s32 0, %v203
      %v205 = vrot.slane %v200, %v204
      %v207 = vadd.f32 %v196, %v205
      %v208 = vadd.f32 %v197, %v205
      %v209 = vadd.f32 %v198, %v205
      %v210 = vadd.f32 %v199, %v205
      %211 = vst [vmem:[#allocation8] sm:$0xff] %v207
      %212 = vst [vmem:[#allocation8 + $0x8] sm:$0xff] %v208
      %213 = vst [vmem:[#allocation8 + $0x10] sm:$0xff] %v209
      %214 = vst [vmem:[#allocation8 + $0x18] sm:$0xff] %v210
    $region29: #{tpu_custom_call.1} parent=1 // pred_fallthru
      _
    // Predicated region
    $region30: #{tpu_custom_call.1} parent=1 // pred_check
      _
    $region31: #{tpu_custom_call.1} parent=1 // pred_check_branch
      %216 = sbr.rel (0) target = $region33
    $region32: #{tpu_custom_call.1} parent=1 // pred_region
      %s218 = ssub.s32 512, 512
      %219 = vsyncadd [#allocation5], %s218
      %s220 = sshll.u32 [#allocation8], 4
      %s221 = int_to_ptr.vmem [resolvable:$true] %s220
      %226 = dma.vmem_to_hbm [thread:$0]  %s221, 512, %s3, [#allocation5], 128, 128, 8
    $region33: #{tpu_custom_call.1} parent=1 // pred_fallthru
      _
    // Predicated region
    $region34: #{tpu_custom_call.1} parent=1 // pred_check
      _
    $region35: #{tpu_custom_call.1} parent=1 // pred_check_branch
      %228 = sbr.rel (0) target = $region37
    $region36: #{tpu_custom_call.1} parent=1 // pred_region
      %229 = dma.done [#allocation5], 512
    $region37: #{tpu_custom_call.1} parent=1 // pred_fallthru
      _
    %230 = vsyncpa [#allocation4], 1
    %231 = vsyncpa [#allocation7], 1
    %232 = vsyncpa [#allocation5], 1

</llo_original>
